<compile_context>
chip_gen: v6e
topology: v6e:2x2x1
jax: 0.10.0
libtpu: 0.0.40
codegen_flags: <defaults>
</compile_context>

<pallas_src>
import jax
import jax.numpy as jnp
from jax.experimental import pallas as pl
from jax.experimental.pallas import tpu as pltpu

OUT_PAD = 128  # lane-dense padded width of the final (scalar) output


def qnet_kernel(s_ref, a_ref, w1s_ref, w1a_ref, b1_ref, w2_ref, b2_ref,
                w3p_ref, b3p_ref, o_ref):
    # s_ref: (TB, space_dim), a_ref: (TB, action_dim) batch tiles.
    h1 = jnp.dot(s_ref[...], w1s_ref[...], preferred_element_type=jnp.float32)
    h1 = h1 + jnp.dot(a_ref[...], w1a_ref[...], preferred_element_type=jnp.float32)
    h1 = jnp.maximum(h1 + b1_ref[...], 0.0)

    h2 = jnp.dot(h1, w2_ref[...], preferred_element_type=jnp.float32) + b2_ref[...]
    h2 = jnp.maximum(h2, 0.0)

    # Final layer: (TB, hidden) @ (hidden, 128) -- column 0 holds the real q,
    # columns 1..127 are zero-padded so the store is a full lane-dense block.
    q = jnp.dot(h2, w3p_ref[...], preferred_element_type=jnp.float32) + b3p_ref[...]
    o_ref[...] = q.astype(o_ref.dtype)


def _pick_tile_b(B):
    """Whole-batch tile for small/medium B; big multiple-of-128 tiles otherwise."""
    if B <= 512:
        return B
    for t in (1024, 512, 256, 128):
        if B % t == 0:
            return t
    return B  # fallback: single grid step


def q_net_forward(state, action, kernel_params, *, tile_b=None):
    """Pallas implementation of Q_Net.forward(state, action) -> (B, 1)."""
    w1s, w1a, b1, w2, b2, w3p, b3p = kernel_params
    B, space_dim = state.shape
    action_dim = action.shape[1]
    hidden = w2.shape[0]

    tb = _pick_tile_b(B) if tile_b is None else tile_b
    assert B % tb == 0, "batch must be a multiple of the batch tile"
    grid = (B // tb,)

    def batch_map(i):
        return (i, 0)

    def whole_map(i):
        return (0, 0)

    out_padded = pl.pallas_call(
        qnet_kernel,
        out_shape=jax.ShapeDtypeStruct((B, OUT_PAD), jnp.float32),
        grid=grid,
        in_specs=[
            pl.BlockSpec((tb, space_dim), batch_map),       # state tile
            pl.BlockSpec((tb, action_dim), batch_map),      # action tile
            pl.BlockSpec((space_dim, hidden), whole_map),   # w1_state  (resident)
            pl.BlockSpec((action_dim, hidden), whole_map),  # w1_action (resident)
            pl.BlockSpec((1, hidden), whole_map),           # b1
            pl.BlockSpec((hidden, hidden), whole_map),      # w2
            pl.BlockSpec((1, hidden), whole_map),           # b2
            pl.BlockSpec((hidden, OUT_PAD), whole_map),     # w3 (lane-padded)
            pl.BlockSpec((1, OUT_PAD), whole_map),          # b3 (lane-padded)
        ],
        out_specs=pl.BlockSpec((tb, OUT_PAD), batch_map),
        compiler_params=pltpu.CompilerParams(
            dimension_semantics=("parallel",)),
    )(state, action, w1s, w1a, b1, w2, b2, w3p, b3p)

    # Column 0 of the padded output is the q-value.
    return out_padded[:, :1]


def init_torch_like_params(key, space_dim, action_dim, hidden):
    """Params in the torch.nn.Linear layout (W as (in, out), bias (out,))."""
    in_dim = space_dim + action_dim
    ks = jax.random.split(key, 6)

    def linear(kw, kb, fan_in, fan_out):
        bound = 1.0 / jnp.sqrt(jnp.float32(fan_in))
        w = jax.random.uniform(kw, (fan_in, fan_out), jnp.float32, -bound, bound)
        b = jax.random.uniform(kb, (fan_out,), jnp.float32, -bound, bound)
        return w, b

    w1, b1 = linear(ks[0], ks[1], in_dim, hidden)
    w2, b2 = linear(ks[2], ks[3], hidden, hidden)
    w3, b3 = linear(ks[4], ks[5], hidden, 1)
    return (w1, b1, w2, b2, w3, b3)


def prepare_kernel_params(torch_params, space_dim):
    """One-time parameter preprocessing into the kernel-friendly layout."""
    w1, b1, w2, b2, w3, b3 = torch_params
    hidden = w2.shape[0]
    w1s = w1[:space_dim]            # (space_dim, hidden)
    w1a = w1[space_dim:]            # (action_dim, hidden)
    w3p = jnp.zeros((hidden, OUT_PAD), jnp.float32).at[:, 0].set(w3[:, 0])
    b3p = jnp.zeros((1, OUT_PAD), jnp.float32).at[0, 0].set(b3[0])
    return (w1s, w1a,
            b1.reshape(1, hidden), w2, b2.reshape(1, hidden),
            w3p, b3p)


def q_net_reference(state, action, torch_params):
    """Pure-JAX reference mirroring the PyTorch forward."""
    w1, b1, w2, b2, w3, b3 = torch_params
    q = jnp.concatenate([state, action], axis=1)
    q = jax.nn.relu(q @ w1 + b1)
    q = jax.nn.relu(q @ w2 + b2)
    return q @ w3 + b3


if __name__ == "__main__":
    # Small deterministic shapes consistent with the module:
    #   observation_space.shape[0] = 4, action_space.shape[0] = 2, hidden = 32
    B, SPACE_DIM, ACTION_DIM, HIDDEN = 16, 4, 2, 32

    key = jax.random.PRNGKey(0)
    k_state, k_action, k_params = jax.random.split(key, 3)

    state = jax.random.normal(k_state, (B, SPACE_DIM), jnp.float32)
    action = jax.random.normal(k_action, (B, ACTION_DIM), jnp.float32)

    torch_params = init_torch_like_params(k_params, SPACE_DIM, ACTION_DIM, HIDDEN)
    kernel_params = prepare_kernel_params(torch_params, SPACE_DIM)

    q = q_net_forward(state, action, kernel_params)
    q = jax.block_until_ready(q)

    q_ref = q_net_reference(state, action, torch_params)
    assert q.shape == (B, 1)
    assert jnp.allclose(q, q_ref, atol=1e-5, rtol=1e-5), "mismatch vs reference"

    print("KERNEL_OK")
</pallas_src>

<mosaic_0001>
module attributes {stable_mosaic.version = 11 : i64} {
  func.func @qnet_kernel(%arg0: i32, %arg1: memref<16x4xf32, #tpu.memory_space<vmem>>, %arg2: memref<16x2xf32, #tpu.memory_space<vmem>>, %arg3: memref<4x32xf32, #tpu.memory_space<vmem>>, %arg4: memref<2x32xf32, #tpu.memory_space<vmem>>, %arg5: memref<1x32xf32, #tpu.memory_space<vmem>>, %arg6: memref<32x32xf32, #tpu.memory_space<vmem>>, %arg7: memref<1x32xf32, #tpu.memory_space<vmem>>, %arg8: memref<32x128xf32, #tpu.memory_space<vmem>>, %arg9: memref<1x128xf32, #tpu.memory_space<vmem>>, %arg10: memref<16x128xf32, #tpu.memory_space<vmem>>) attributes {dimension_semantics = [#tpu.dimension_semantics<parallel>], iteration_bounds = array<i64: 1>, scalar_prefetch = 0 : i64, scratch_operands = 0 : i64, tpu.core_type = #tpu.core_type<tc>, window_params = [{transform_indices = @transform_0, window_bounds = array<i64: 16, 4>}, {transform_indices = @transform_1, window_bounds = array<i64: 16, 2>}, {pipeline_mode = #tpu.pipeline_mode<synchronous>, transform_indices = @transform_2, window_bounds = array<i64: 4, 32>}, {pipeline_mode = #tpu.pipeline_mode<synchronous>, transform_indices = @transform_3, window_bounds = array<i64: 2, 32>}, {pipeline_mode = #tpu.pipeline_mode<synchronous>, transform_indices = @transform_4, window_bounds = array<i64: 1, 32>}, {pipeline_mode = #tpu.pipeline_mode<synchronous>, transform_indices = @transform_5, window_bounds = array<i64: 32, 32>}, {pipeline_mode = #tpu.pipeline_mode<synchronous>, transform_indices = @transform_6, window_bounds = array<i64: 1, 32>}, {pipeline_mode = #tpu.pipeline_mode<synchronous>, transform_indices = @transform_7, window_bounds = array<i64: 32, 128>}, {pipeline_mode = #tpu.pipeline_mode<synchronous>, transform_indices = @transform_8, window_bounds = array<i64: 1, 128>}, {transform_indices = @transform_9, window_bounds = array<i64: 16, 128>}]} {
    %c0 = arith.constant 0 : index
    %c0_0 = arith.constant 0 : index
    %0 = vector.load %arg1[%c0, %c0_0] : memref<16x4xf32, #tpu.memory_space<vmem>>, vector<16x4xf32>
    %c0_1 = arith.constant 0 : index
    %c0_2 = arith.constant 0 : index
    %1 = vector.load %arg3[%c0_1, %c0_2] : memref<4x32xf32, #tpu.memory_space<vmem>>, vector<4x32xf32>
    %cst = arith.constant dense<0.000000e+00> : vector<16x32xf32>
    %2 = tpu.matmul %0, %1, %cst {dimension_numbers = #tpu.dot_dimension_numbers<[1], [0], [0], [1], [0, 0, 1, 1], [], []>} : vector<16x4xf32>, vector<4x32xf32>, vector<16x32xf32> -> vector<16x32xf32>
    %c0_3 = arith.constant 0 : index
    %c0_4 = arith.constant 0 : index
    %3 = vector.load %arg2[%c0_3, %c0_4] : memref<16x2xf32, #tpu.memory_space<vmem>>, vector<16x2xf32>
    %c0_5 = arith.constant 0 : index
    %c0_6 = arith.constant 0 : index
    %4 = vector.load %arg4[%c0_5, %c0_6] : memref<2x32xf32, #tpu.memory_space<vmem>>, vector<2x32xf32>
    %cst_7 = arith.constant dense<0.000000e+00> : vector<16x32xf32>
    %5 = tpu.matmul %3, %4, %cst_7 {dimension_numbers = #tpu.dot_dimension_numbers<[1], [0], [0], [1], [0, 0, 1, 1], [], []>} : vector<16x2xf32>, vector<2x32xf32>, vector<16x32xf32> -> vector<16x32xf32>
    %6 = arith.addf %2, %5 : vector<16x32xf32>
    %c0_8 = arith.constant 0 : index
    %c0_9 = arith.constant 0 : index
    %7 = vector.load %arg5[%c0_8, %c0_9] : memref<1x32xf32, #tpu.memory_space<vmem>>, vector<1x32xf32>
    %8 = vector.broadcast %7 : vector<1x32xf32> to vector<16x32xf32>
    %9 = arith.addf %6, %8 : vector<16x32xf32>
    %cst_10 = arith.constant 0.000000e+00 : f32
    %10 = vector.broadcast %cst_10 : f32 to vector<16x32xf32>
    %11 = arith.maximumf %9, %10 : vector<16x32xf32>
    %c0_11 = arith.constant 0 : index
    %c0_12 = arith.constant 0 : index
    %12 = vector.load %arg6[%c0_11, %c0_12] : memref<32x32xf32, #tpu.memory_space<vmem>>, vector<32x32xf32>
    %cst_13 = arith.constant dense<0.000000e+00> : vector<16x32xf32>
    %13 = tpu.matmul %11, %12, %cst_13 {dimension_numbers = #tpu.dot_dimension_numbers<[1], [0], [0], [1], [0, 0, 1, 1], [], []>} : vector<16x32xf32>, vector<32x32xf32>, vector<16x32xf32> -> vector<16x32xf32>
    %c0_14 = arith.constant 0 : index
    %c0_15 = arith.constant 0 : index
    %14 = vector.load %arg7[%c0_14, %c0_15] : memref<1x32xf32, #tpu.memory_space<vmem>>, vector<1x32xf32>
    %15 = vector.broadcast %14 : vector<1x32xf32> to vector<16x32xf32>
    %16 = arith.addf %13, %15 : vector<16x32xf32>
    %cst_16 = arith.constant 0.000000e+00 : f32
    %17 = vector.broadcast %cst_16 : f32 to vector<16x32xf32>
    %18 = arith.maximumf %16, %17 : vector<16x32xf32>
    %c0_17 = arith.constant 0 : index
    %c0_18 = arith.constant 0 : index
    %19 = vector.load %arg8[%c0_17, %c0_18] : memref<32x128xf32, #tpu.memory_space<vmem>>, vector<32x128xf32>
    %cst_19 = arith.constant dense<0.000000e+00> : vector<16x128xf32>
    %20 = tpu.matmul %18, %19, %cst_19 {dimension_numbers = #tpu.dot_dimension_numbers<[1], [0], [0], [1], [0, 0, 1, 1], [], []>} : vector<16x32xf32>, vector<32x128xf32>, vector<16x128xf32> -> vector<16x128xf32>
    %c0_20 = arith.constant 0 : index
    %c0_21 = arith.constant 0 : index
    %21 = vector.load %arg9[%c0_20, %c0_21] : memref<1x128xf32, #tpu.memory_space<vmem>>, vector<1x128xf32>
    %22 = vector.broadcast %21 : vector<1x128xf32> to vector<16x128xf32>
    %23 = arith.addf %20, %22 : vector<16x128xf32>
    %c0_22 = arith.constant 0 : index
    %c0_23 = arith.constant 0 : index
    %24 = vector.load %arg10[%c0_22, %c0_23] : memref<16x128xf32, #tpu.memory_space<vmem>>, vector<16x128xf32>
    tpu.vector_store %arg10[%c0_22, %c0_23], %23 {strides = array<i32>} : memref<16x128xf32, #tpu.memory_space<vmem>>, vector<16x128xf32>,
    return
  }
  func.func @transform_0(%arg0: i32) -> (i32, i32) {
    %c0_i32 = arith.constant 0 : i32
    %c0_i32_0 = arith.constant 0 : i32
    return %arg0, %c0_i32 : i32, i32
  }
  func.func @transform_1(%arg0: i32) -> (i32, i32) {
    %c0_i32 = arith.constant 0 : i32
    %c0_i32_0 = arith.constant 0 : i32
    return %arg0, %c0_i32 : i32, i32
  }
  func.func @transform_2(%arg0: i32) -> (i32, i32) {
    %c0_i32 = arith.constant 0 : i32
    %c0_i32_0 = arith.constant 0 : i32
    %c0_i32_1 = arith.constant 0 : i32
    return %c0_i32, %c0_i32_0 : i32, i32
  }
  func.func @transform_3(%arg0: i32) -> (i32, i32) {
    %c0_i32 = arith.constant 0 : i32
    %c0_i32_0 = arith.constant 0 : i32
    %c0_i32_1 = arith.constant 0 : i32
    return %c0_i32, %c0_i32_0 : i32, i32
  }
  func.func @transform_4(%arg0: i32) -> (i32, i32) {
    %c0_i32 = arith.constant 0 : i32
    %c0_i32_0 = arith.constant 0 : i32
    %c0_i32_1 = arith.constant 0 : i32
    return %c0_i32, %c0_i32_0 : i32, i32
  }
  func.func @transform_5(%arg0: i32) -> (i32, i32) {
    %c0_i32 = arith.constant 0 : i32
    %c0_i32_0 = arith.constant 0 : i32
    %c0_i32_1 = arith.constant 0 : i32
    return %c0_i32, %c0_i32_0 : i32, i32
  }
  func.func @transform_6(%arg0: i32) -> (i32, i32) {
    %c0_i32 = arith.constant 0 : i32
    %c0_i32_0 = arith.constant 0 : i32
    %c0_i32_1 = arith.constant 0 : i32
    return %c0_i32, %c0_i32_0 : i32, i32
  }
  func.func @transform_7(%arg0: i32) -> (i32, i32) {
    %c0_i32 = arith.constant 0 : i32
    %c0_i32_0 = arith.constant 0 : i32
    %c0_i32_1 = arith.constant 0 : i32
    return %c0_i32, %c0_i32_0 : i32, i32
  }
  func.func @transform_8(%arg0: i32) -> (i32, i32) {
    %c0_i32 = arith.constant 0 : i32
    %c0_i32_0 = arith.constant 0 : i32
    %c0_i32_1 = arith.constant 0 : i32
    return %c0_i32, %c0_i32_0 : i32, i32
  }
  func.func @transform_9(%arg0: i32) -> (i32, i32) {
    %c0_i32 = arith.constant 0 : i32
    %c0_i32_0 = arith.constant 0 : i32
    return %arg0, %c0_i32 : i32, i32
  }
}

</mosaic_0001>

<llo_original>
// kernel: tpu_custom_call.1
$region0: #{tpu_custom_call.1}
  #allocation0 [shape = 'u32[]', space=smem, size = 0x4, offset = 0x4, fixed_abs, tag = 'smem constant byte address 0x4 - core index']
  #allocation1 [shape = 'u32[144,128]{1,0:T(1,128)}', space=vmem, size = 0x12000, scoped, tag = 'internal scratch']
  %s0 = inlined_call_operand.vmem [shape: f32[16,4], index: 0, kind: input, shape index: {}]
  %s1 = inlined_call_operand.vmem [shape: f32[16,2], index: 1, kind: input, shape index: {}]
  %s2 = inlined_call_operand.vmem [shape: f32[4,32], index: 2, kind: input, shape index: {}]
  %s3 = inlined_call_operand.vmem [shape: f32[2,32], index: 3, kind: input, shape index: {}]
  %s4 = inlined_call_operand.vmem [shape: f32[1,32], index: 4, kind: input, shape index: {}]
  %s5 = inlined_call_operand.vmem [shape: f32[32,32], index: 5, kind: input, shape index: {}]
  %s6 = inlined_call_operand.vmem [shape: f32[1,32], index: 6, kind: input, shape index: {}]
  %s7 = inlined_call_operand.hbm [shape: f32[32,128], index: 7, kind: input, shape index: {}]
  %s8 = inlined_call_operand.vmem [shape: f32[1,128], index: 8, kind: input, shape index: {}]
  %s9 = inlined_call_operand.hbm [shape: f32[16,128], index: 9, kind: output, shape index: {}]
  %s10 = sld [smem:[#allocation0]]
  $region50: #{tpu_custom_call.1} parent=0
    _
  %s12 = ssub.s32 1, %s10
  %s13 = scalar_select 0, %s12, %s10
  $region1: #{tpu_custom_call.1} parent=0
    #allocation2 [shape = 'u8[16384]{0}', space=vmem, size = 0x4000, scoped, tag = 'input window, operand 7, single buffered']
    #allocation3 [shape = 's32[1]{0}', space=sflag, size = 0x4, scoped, tag = 'scoped memory for tpu_custom_call.1']
    #allocation4 [shape = 's32[1]{0}', space=sflag, size = 0x4, scoped, tag = 'scoped memory for tpu_custom_call.1']
    #allocation5 [shape = 'u8[8192]{0}', space=vmem, size = 0x2000, scoped, tag = 'output window, operand 0, single buffered']
    %14 = vsyncpa [#allocation3], 0
    %15 = vsyncpa [#allocation4], 0
    // Predicated region
    $region2: #{tpu_custom_call.1} parent=1 // pred_check
      _
    $region3: #{tpu_custom_call.1} parent=1 // pred_check_branch
      %17 = sbr.rel (0) target = $region5
    $region4: #{tpu_custom_call.1} parent=1 // pred_region
      _
    $region5: #{tpu_custom_call.1} parent=1 // pred_fallthru
      _
    // Predicated region
    $region6: #{tpu_custom_call.1} parent=1 // pred_check
      _
    $region7: #{tpu_custom_call.1} parent=1 // pred_check_branch
      %19 = sbr.rel (0) target = $region9
    $region8: #{tpu_custom_call.1} parent=1 // pred_region
      _
    $region9: #{tpu_custom_call.1} parent=1 // pred_fallthru
      _
    // Predicated region
    $region10: #{tpu_custom_call.1} parent=1 // pred_check
      _
    $region11: #{tpu_custom_call.1} parent=1 // pred_check_branch
      %21 = sbr.rel (0) target = $region13
    $region12: #{tpu_custom_call.1} parent=1 // pred_region
      _
    $region13: #{tpu_custom_call.1} parent=1 // pred_fallthru
      _
    // Predicated region
    $region14: #{tpu_custom_call.1} parent=1 // pred_check
      _
    $region15: #{tpu_custom_call.1} parent=1 // pred_check_branch
      %23 = sbr.rel (0) target = $region17
    $region16: #{tpu_custom_call.1} parent=1 // pred_region
      _
    $region17: #{tpu_custom_call.1} parent=1 // pred_fallthru
      _
    // Predicated region
    $region18: #{tpu_custom_call.1} parent=1 // pred_check
      _
    $region19: #{tpu_custom_call.1} parent=1 // pred_check_branch
      %25 = sbr.rel (0) target = $region21
    $region20: #{tpu_custom_call.1} parent=1 // pred_region
      _
    $region21: #{tpu_custom_call.1} parent=1 // pred_fallthru
      _
    // Predicated region
    $region22: #{tpu_custom_call.1} parent=1 // pred_check
      _
    $region23: #{tpu_custom_call.1} parent=1 // pred_check_branch
      %27 = sbr.rel (0) target = $region25
    $region24: #{tpu_custom_call.1} parent=1 // pred_region
      _
    $region25: #{tpu_custom_call.1} parent=1 // pred_fallthru
      _
    // Predicated region
    $region26: #{tpu_custom_call.1} parent=1 // pred_check
      _
    $region27: #{tpu_custom_call.1} parent=1 // pred_check_branch
      %29 = sbr.rel (0) target = $region29
    $region28: #{tpu_custom_call.1} parent=1 // pred_region
      _
    $region29: #{tpu_custom_call.1} parent=1 // pred_fallthru
      _
    // Predicated region
    $region30: #{tpu_custom_call.1} parent=1 // pred_check
      _
    $region31: #{tpu_custom_call.1} parent=1 // pred_check_branch
      %31 = sbr.rel (0) target = $region33
    $region32: #{tpu_custom_call.1} parent=1 // pred_region
      %s33 = ssub.s32 512, 512
      %34 = vsyncadd [#allocation3], %s33
      %s35 = sshll.u32 [#allocation2], 4
      %s36 = int_to_ptr.vmem [resolvable:$true] %s35
      %41 = dma.hbm_to_vmem [thread:$0]  %s7, 512, %s36, [#allocation3], 128, 128, 8
    $region33: #{tpu_custom_call.1} parent=1 // pred_fallthru
      _
    // Predicated region
    $region34: #{tpu_custom_call.1} parent=1 // pred_check
      _
    $region35: #{tpu_custom_call.1} parent=1 // pred_check_branch
      %43 = sbr.rel (0) target = $region37
    $region36: #{tpu_custom_call.1} parent=1 // pred_region
      _
    $region37: #{tpu_custom_call.1} parent=1 // pred_fallthru
      _
    // Predicated region
    $region38: #{tpu_custom_call.1} parent=1 // pred_check
      _
    $region39: #{tpu_custom_call.1} parent=1 // pred_check_branch
      %45 = sbr.rel (0) target = $region41
    $region40: #{tpu_custom_call.1} parent=1 // pred_region
      %46 = dma.done [#allocation3], 512
    $region41: #{tpu_custom_call.1} parent=1 // pred_fallthru
      _
    %v47 = vld [vmem:[%s0] sm:$0xff]
    %v48 = vld [vmem:[%s0 + $0x8] sm:$0xff]
    %v49 = vld [vmem:[%s2] sm:$0xf]
    %v50 = vld [vmem:[%s1] sm:$0xff]
    %v51 = vld [vmem:[%s1 + $0x8] sm:$0xff]
    %v52 = vld [vmem:[%s3] sm:$0x3]
    %vm53 = vcmask 15360
    %v55 = vsel %vm53, %v50, 0
    %v58 = vsel %vm53, %v51, 0
    %vm60 = vcmask 1041408
    %v62 = vsel %vm60, %v52, 0
    %64 = vmatprep.subr.mxu0 0.0
    %65 = vmatpush1.msra.mxu0 0.0
    %66 = vmatprep.subr.mxu0 0.0
    %67 = vmatpush1.msra.mxu0 0.0
    %68 = vmatprep.subr.mxu0 0.0
    %69 = vmatpush1.msra.mxu0 0.0
    %70 = vmatprep.subr.mxu0 0.0
    %71 = vmatpush1.msra.mxu0 0.0
    %72 = vmatprep.subr.mxu0 0.0
    %73 = vmatpush1.msra.mxu0 0.0
    %74 = vmatprep.subr.mxu0 0.0
    %75 = vmatpush1.msra.mxu0 0.0
    %76 = vmatprep.subr.mxu0 0.0
    %77 = vmatpush1.msra.mxu0 0.0
    %78 = vmatprep.subr.mxu0 0.0
    %79 = vmatpush1.msra.mxu0 0.0
    %80 = vmatprep.subr.mxu0 0.0
    %81 = vmatpush1.msra.mxu0 0.0
    %82 = vmatprep.subr.mxu0 0.0
    %83 = vmatpush1.msra.mxu0 0.0
    %84 = vmatprep.subr.mxu0 0.0
    %85 = vmatpush1.msra.mxu0 0.0
    %86 = vmatprep.subr.mxu0 0.0
    %87 = vmatpush1.msra.mxu0 0.0
    %88 = vmatprep.subr.mxu0 0.0
    %89 = vmatpush1.msra.mxu0 0.0
    %90 = vmatprep.subr.mxu0 0.0
    %91 = vmatpush1.msra.mxu0 0.0
    %92 = vmatprep.subr.mxu0 0.0
    %93 = vmatpush1.msra.mxu0 0.0
    %94 = vmatprep.subr.mxu0 0.0
    %95 = vmatpush1.msra.mxu0 %v62
    %96 = vmatprep.subr.mxu0 0.0
    %97 = vmatpush2.msra.mxu0 0.0
    %98 = vmatprep.subr.mxu0 0.0
    %99 = vmatpush2.msra.mxu0 0.0
    %100 = vmatprep.subr.mxu0 0.0
    %101 = vmatpush2.msra.mxu0 0.0
    %102 = vmatprep.subr.mxu0 0.0
    %103 = vmatpush2.msra.mxu0 0.0
    %104 = vmatprep.subr.mxu0 0.0
    %105 = vmatpush2.msra.mxu0 0.0
    %106 = vmatprep.subr.mxu0 0.0
    %107 = vmatpush2.msra.mxu0 0.0
    %108 = vmatprep.subr.mxu0 0.0
    %109 = vmatpush2.msra.mxu0 0.0
    %110 = vmatprep.subr.mxu0 0.0
    %111 = vmatpush2.msra.mxu0 0.0
    %112 = vmatprep.subr.mxu0 0.0
    %113 = vmatpush2.msra.mxu0 0.0
    %114 = vmatprep.subr.mxu0 0.0
    %115 = vmatpush2.msra.mxu0 0.0
    %116 = vmatprep.subr.mxu0 0.0
    %117 = vmatpush2.msra.mxu0 0.0
    %118 = vmatprep.subr.mxu0 0.0
    %119 = vmatpush2.msra.mxu0 0.0
    %120 = vmatprep.subr.mxu0 0.0
    %121 = vmatpush2.msra.mxu0 0.0
    %122 = vmatprep.subr.mxu0 0.0
    %123 = vmatpush2.msra.mxu0 0.0
    %124 = vmatprep.subr.mxu0 0.0
    %125 = vmatpush2.msra.mxu0 0.0
    %126 = vmatprep.subr.mxu0 0.0
    %127 = vmatpush2.msra.mxu0 0.0
    %128 = vmatprep.mubr.f32.mxu0 0.0
    %129 = vmatmul.mubr.f32.gmra.mxu0 %v55
    %v130 = vpop.f32.mrf.mxu0
    %v131 = vadd.f32 0.0, %v130
    %v132 = vpop.f32.mrf.mxu0
    %133 = vmatprep.mubr.f32.mxu0 0.0
    %134 = vmatmul.mubr.f32.gmra.mxu0 %v58
    %v135 = vpop.f32.mrf.mxu0
    %v136 = vadd.f32 0.0, %v135
    %v137 = vpop.f32.mrf.mxu0
    %138 = vdwg.mxu0
    %vm139 = vcmask 31744
    %v141 = vsel %vm139, %v47, 0
    %v144 = vsel %vm139, %v48, 0
    %vm146 = vcmask 1043456
    %v148 = vsel %vm146, %v49, 0
    %150 = vmatprep.subr.mxu0 0.0
    %151 = vmatpush1.msra.mxu0 0.0
    %152 = vmatprep.subr.mxu0 0.0
    %153 = vmatpush1.msra.mxu0 0.0
    %154 = vmatprep.subr.mxu0 0.0
    %155 = vmatpush1.msra.mxu0 0.0
    %156 = vmatprep.subr.mxu0 0.0
    %157 = vmatpush1.msra.mxu0 0.0
    %158 = vmatprep.subr.mxu0 0.0
    %159 = vmatpush1.msra.mxu0 0.0
    %160 = vmatprep.subr.mxu0 0.0
    %161 = vmatpush1.msra.mxu0 0.0
    %162 = vmatprep.subr.mxu0 0.0
    %163 = vmatpush1.msra.mxu0 0.0
    %164 = vmatprep.subr.mxu0 0.0
    %165 = vmatpush1.msra.mxu0 0.0
    %166 = vmatprep.subr.mxu0 0.0
    %167 = vmatpush1.msra.mxu0 0.0
    %168 = vmatprep.subr.mxu0 0.0
    %169 = vmatpush1.msra.mxu0 0.0
    %170 = vmatprep.subr.mxu0 0.0
    %171 = vmatpush1.msra.mxu0 0.0
    %172 = vmatprep.subr.mxu0 0.0
    %173 = vmatpush1.msra.mxu0 0.0
    %174 = vmatprep.subr.mxu0 0.0
    %175 = vmatpush1.msra.mxu0 0.0
    %176 = vmatprep.subr.mxu0 0.0
    %177 = vmatpush1.msra.mxu0 0.0
    %178 = vmatprep.subr.mxu0 0.0
    %179 = vmatpush1.msra.mxu0 0.0
    %180 = vmatprep.subr.mxu0 0.0
    %181 = vmatpush1.msra.mxu0 %v148
    %182 = vmatprep.subr.mxu0 0.0
    %183 = vmatpush2.msra.mxu0 0.0
    %184 = vmatprep.subr.mxu0 0.0
    %185 = vmatpush2.msra.mxu0 0.0
    %186 = vmatprep.subr.mxu0 0.0
    %187 = vmatpush2.msra.mxu0 0.0
    %188 = vmatprep.subr.mxu0 0.0
    %189 = vmatpush2.msra.mxu0 0.0
    %190 = vmatprep.subr.mxu0 0.0
    %191 = vmatpush2.msra.mxu0 0.0
    %192 = vmatprep.subr.mxu0 0.0
    %193 = vmatpush2.msra.mxu0 0.0
    %194 = vmatprep.subr.mxu0 0.0
    %195 = vmatpush2.msra.mxu0 0.0
    %196 = vmatprep.subr.mxu0 0.0
    %197 = vmatpush2.msra.mxu0 0.0
    %198 = vmatprep.subr.mxu0 0.0
    %199 = vmatpush2.msra.mxu0 0.0
    %200 = vmatprep.subr.mxu0 0.0
    %201 = vmatpush2.msra.mxu0 0.0
    %202 = vmatprep.subr.mxu0 0.0
    %203 = vmatpush2.msra.mxu0 0.0
    %204 = vmatprep.subr.mxu0 0.0
    %205 = vmatpush2.msra.mxu0 0.0
    %206 = vmatprep.subr.mxu0 0.0
    %207 = vmatpush2.msra.mxu0 0.0
    %208 = vmatprep.subr.mxu0 0.0
    %209 = vmatpush2.msra.mxu0 0.0
    %210 = vmatprep.subr.mxu0 0.0
    %211 = vmatpush2.msra.mxu0 0.0
    %212 = vmatprep.subr.mxu0 0.0
    %213 = vmatpush2.msra.mxu0 0.0
    %214 = vmatprep.mubr.f32.mxu0 0.0
    %215 = vmatmul.mubr.f32.gmra.mxu0 %v141
    %v216 = vpop.f32.mrf.mxu0
    %v217 = vadd.f32 %v131, %v216
    %v218 = vpop.f32.mrf.mxu0
    %219 = vmatprep.mubr.f32.mxu0 0.0
    %220 = vmatmul.mubr.f32.gmra.mxu0 %v144
    %v221 = vpop.f32.mrf.mxu0
    %v222 = vadd.f32 %v136, %v221
    %v223 = vpop.f32.mrf.mxu0
    %224 = vdwg.mxu0
    %v225 = vld [vmem:[%s4] sm:$0x1]
    %v227 = vlaneseq
    %v228 = vshrl.u32 %v227, 7
    %v229 = vsub.s32 0, %v228
    %v230 = vrot.slane %v225, %v229
    %v232 = vadd.f32 %v217, %v230
    %v233 = vadd.f32 %v222, %v230
    %v234 = vmax.f32 %v232, 0.0
    %v235 = vmax.f32 %v233, 0.0
    %v236 = vld [vmem:[%s5] sm:$0xff]
    %v237 = vld [vmem:[%s5 + $0x8] sm:$0xff]
    %v238 = vld [vmem:[%s5 + $0x10] sm:$0xff]
    %v239 = vld [vmem:[%s5 + $0x18] sm:$0xff]
    %v240 = vld [vmem:[%s6] sm:$0x1]
    %v242 = vlaneseq
    %v243 = vshrl.u32 %v242, 7
    %v244 = vsub.s32 0, %v243
    %v245 = vrot.slane %v240, %v244
    %vm247 = vcmask 261120
    %v249 = vsel %vm247, %v234, 0
    %v252 = vsel %vm247, %v235, 0
    %254 = vmatprep.subr.mxu0 0.0
    %255 = vmatpush1.msra.mxu0 0.0
    %256 = vmatprep.subr.mxu0 0.0
    %257 = vmatpush1.msra.mxu0 0.0
    %258 = vmatprep.subr.mxu0 0.0
    %259 = vmatpush1.msra.mxu0 0.0
    %260 = vmatprep.subr.mxu0 0.0
    %261 = vmatpush1.msra.mxu0 0.0
    %262 = vmatprep.subr.mxu0 0.0
    %263 = vmatpush1.msra.mxu0 0.0
    %264 = vmatprep.subr.mxu0 0.0
    %265 = vmatpush1.msra.mxu0 0.0
    %266 = vmatprep.subr.mxu0 0.0
    %267 = vmatpush1.msra.mxu0 0.0
    %268 = vmatprep.subr.mxu0 0.0
    %269 = vmatpush1.msra.mxu0 0.0
    %270 = vmatprep.subr.mxu0 0.0
    %271 = vmatpush1.msra.mxu0 0.0
    %272 = vmatprep.subr.mxu0 0.0
    %273 = vmatpush1.msra.mxu0 0.0
    %274 = vmatprep.subr.mxu0 0.0
    %275 = vmatpush1.msra.mxu0 0.0
    %276 = vmatprep.subr.mxu0 0.0
    %277 = vmatpush1.msra.mxu0 0.0
    %278 = vmatprep.subr.mxu0 0.0
    %279 = vmatpush1.msra.mxu0 %v239
    %280 = vmatprep.subr.mxu0 0.0
    %281 = vmatpush1.msra.mxu0 %v238
    %282 = vmatprep.subr.mxu0 0.0
    %283 = vmatpush1.msra.mxu0 %v237
    %284 = vmatprep.subr.mxu0 0.0
    %285 = vmatpush1.msra.mxu0 %v236
    %286 = vmatprep.subr.mxu0 0.0
    %287 = vmatpush2.msra.mxu0 0.0
    %288 = vmatprep.subr.mxu0 0.0
    %289 = vmatpush2.msra.mxu0 0.0
    %290 = vmatprep.subr.mxu0 0.0
    %291 = vmatpush2.msra.mxu0 0.0
    %292 = vmatprep.subr.mxu0 0.0
    %293 = vmatpush2.msra.mxu0 0.0
    %294 = vmatprep.subr.mxu0 0.0
    %295 = vmatpush2.msra.mxu0 0.0
    %296 = vmatprep.subr.mxu0 0.0
    %297 = vmatpush2.msra.mxu0 0.0
    %298 = vmatprep.subr.mxu0 0.0
    %299 = vmatpush2.msra.mxu0 0.0
    %300 = vmatprep.subr.mxu0 0.0
    %301 = vmatpush2.msra.mxu0 0.0
    %302 = vmatprep.subr.mxu0 0.0
    %303 = vmatpush2.msra.mxu0 0.0
    %304 = vmatprep.subr.mxu0 0.0
    %305 = vmatpush2.msra.mxu0 0.0
    %306 = vmatprep.subr.mxu0 0.0
    %307 = vmatpush2.msra.mxu0 0.0
    %308 = vmatprep.subr.mxu0 0.0
    %309 = vmatpush2.msra.mxu0 0.0
    %310 = vmatprep.subr.mxu0 0.0
    %311 = vmatpush2.msra.mxu0 0.0
    %312 = vmatprep.subr.mxu0 0.0
    %313 = vmatpush2.msra.mxu0 0.0
    %314 = vmatprep.subr.mxu0 0.0
    %315 = vmatpush2.msra.mxu0 0.0
    %316 = vmatprep.subr.mxu0 0.0
    %317 = vmatpush2.msra.mxu0 0.0
    %318 = vmatprep.mubr.f32.mxu0 0.0
    %319 = vmatmul.mubr.f32.gmra.mxu0 %v249
    %v320 = vpop.f32.mrf.mxu0
    %v321 = vadd.f32 %v245, %v320
    %v322 = vpop.f32.mrf.mxu0
    %323 = vmatprep.mubr.f32.mxu0 0.0
    %324 = vmatmul.mubr.f32.gmra.mxu0 %v252
    %v325 = vpop.f32.mrf.mxu0
    %v326 = vadd.f32 %v245, %v325
    %v327 = vpop.f32.mrf.mxu0
    %328 = vdwg.mxu0
    %v329 = vmax.f32 %v321, 0.0
    %v330 = vmax.f32 %v326, 0.0
    %v331 = vld [vmem:[#allocation2] sm:$0xff]
    %v332 = vld [vmem:[#allocation2 + $0x8] sm:$0xff]
    %v333 = vld [vmem:[#allocation2 + $0x10] sm:$0xff]
    %v334 = vld [vmem:[#allocation2 + $0x18] sm:$0xff]
    %v335 = vld [vmem:[%s8] sm:$0x1]
    %v337 = vlaneseq
    %v338 = vshrl.u32 %v337, 7
    %v339 = vsub.s32 0, %v338
    %v340 = vrot.slane %v335, %v339
    %v343 = vsel %vm247, %v329, 0
    %v346 = vsel %vm247, %v330, 0
    %348 = vmatprep.subr.mxu0 0.0
    %349 = vmatpush1.msra.mxu0 0.0
    %350 = vmatprep.subr.mxu0 0.0
    %351 = vmatpush1.msra.mxu0 0.0
    %352 = vmatprep.subr.mxu0 0.0
    %353 = vmatpush1.msra.mxu0 0.0
    %354 = vmatprep.subr.mxu0 0.0
    %355 = vmatpush1.msra.mxu0 0.0
    %356 = vmatprep.subr.mxu0 0.0
    %357 = vmatpush1.msra.mxu0 0.0
    %358 = vmatprep.subr.mxu0 0.0
    %359 = vmatpush1.msra.mxu0 0.0
    %360 = vmatprep.subr.mxu0 0.0
    %361 = vmatpush1.msra.mxu0 0.0
    %362 = vmatprep.subr.mxu0 0.0
    %363 = vmatpush1.msra.mxu0 0.0
    %364 = vmatprep.subr.mxu0 0.0
    %365 = vmatpush1.msra.mxu0 0.0
    %366 = vmatprep.subr.mxu0 0.0
    %367 = vmatpush1.msra.mxu0 0.0
    %368 = vmatprep.subr.mxu0 0.0
    %369 = vmatpush1.msra.mxu0 0.0
    %370 = vmatprep.subr.mxu0 0.0
    %371 = vmatpush1.msra.mxu0 0.0
    %372 = vmatprep.subr.mxu0 0.0
    %373 = vmatpush1.msra.mxu0 %v334
    %374 = vmatprep.subr.mxu0 0.0
    %375 = vmatpush1.msra.mxu0 %v333
    %376 = vmatprep.subr.mxu0 0.0
    %377 = vmatpush1.msra.mxu0 %v332
    %378 = vmatprep.subr.mxu0 0.0
    %379 = vmatpush1.msra.mxu0 %v331
    %380 = vmatprep.subr.mxu0 0.0
    %381 = vmatpush2.msra.mxu0 0.0
    %382 = vmatprep.subr.mxu0 0.0
    %383 = vmatpush2.msra.mxu0 0.0
    %384 = vmatprep.subr.mxu0 0.0
    %385 = vmatpush2.msra.mxu0 0.0
    %386 = vmatprep.subr.mxu0 0.0
    %387 = vmatpush2.msra.mxu0 0.0
    %388 = vmatprep.subr.mxu0 0.0
    %389 = vmatpush2.msra.mxu0 0.0
    %390 = vmatprep.subr.mxu0 0.0
    %391 = vmatpush2.msra.mxu0 0.0
    %392 = vmatprep.subr.mxu0 0.0
    %393 = vmatpush2.msra.mxu0 0.0
    %394 = vmatprep.subr.mxu0 0.0
    %395 = vmatpush2.msra.mxu0 0.0
    %396 = vmatprep.subr.mxu0 0.0
    %397 = vmatpush2.msra.mxu0 0.0
    %398 = vmatprep.subr.mxu0 0.0
    %399 = vmatpush2.msra.mxu0 0.0
    %400 = vmatprep.subr.mxu0 0.0
    %401 = vmatpush2.msra.mxu0 0.0
    %402 = vmatprep.subr.mxu0 0.0
    %403 = vmatpush2.msra.mxu0 0.0
    %404 = vmatprep.subr.mxu0 0.0
    %405 = vmatpush2.msra.mxu0 0.0
    %406 = vmatprep.subr.mxu0 0.0
    %407 = vmatpush2.msra.mxu0 0.0
    %408 = vmatprep.subr.mxu0 0.0
    %409 = vmatpush2.msra.mxu0 0.0
    %410 = vmatprep.subr.mxu0 0.0
    %411 = vmatpush2.msra.mxu0 0.0
    %412 = vmatprep.mubr.f32.mxu0 0.0
    %413 = vmatmul.mubr.f32.gmra.mxu0 %v343
    %v414 = vpop.f32.mrf.mxu0
    %v415 = vadd.f32 %v340, %v414
    %v416 = vpop.f32.mrf.mxu0
    %417 = vmatprep.mubr.f32.mxu0 0.0
    %418 = vmatmul.mubr.f32.gmra.mxu0 %v346
    %v419 = vpop.f32.mrf.mxu0
    %v420 = vadd.f32 %v340, %v419
    %v421 = vpop.f32.mrf.mxu0
    %422 = vdwg.mxu0
    %423 = vst [vmem:[#allocation5] sm:$0xff] %v415
    %424 = vst [vmem:[#allocation5 + $0x8] sm:$0xff] %v420
    // Predicated region
    $region42: #{tpu_custom_call.1} parent=1 // pred_check
      _
    $region43: #{tpu_custom_call.1} parent=1 // pred_check_branch
      %426 = sbr.rel (0) target = $region45
    $region44: #{tpu_custom_call.1} parent=1 // pred_region
      %s428 = ssub.s32 256, 256
      %429 = vsyncadd [#allocation4], %s428
      %s430 = sshll.u32 [#allocation5], 4
      %s431 = int_to_ptr.vmem [resolvable:$true] %s430
      %436 = dma.vmem_to_hbm [thread:$0]  %s431, 256, %s9, [#allocation4], 128, 128, 8
    $region45: #{tpu_custom_call.1} parent=1 // pred_fallthru
      _
    // Predicated region
    $region46: #{tpu_custom_call.1} parent=1 // pred_check
      _
    $region47: #{tpu_custom_call.1} parent=1 // pred_check_branch
      %438 = sbr.rel (0) target = $region49
    $region48: #{tpu_custom_call.1} parent=1 // pred_region
      %439 = dma.done [#allocation4], 256
    $region49: #{tpu_custom_call.1} parent=1 // pred_fallthru
      _
    %440 = vsyncpa [#allocation3], 1
    %441 = vsyncpa [#allocation4], 1

</llo_original>
